<compile_context>
chip_gen: v7x
topology: tpu7x:2x2x1
jax: 0.10.0
libtpu: 0.0.40
codegen_flags: <defaults>
</compile_context>

<pallas_src>
import functools

import numpy as np
import jax
import jax.numpy as jnp
from jax.experimental import pallas as pl
from jax.experimental.pallas import tpu as pltpu

LANE = 128
SUB = 16          # bf16 sublane packing: keep block second-minor dims %16 == 0


def _round_up(n, m):
    return (n + m - 1) // m * m


# --------------------------------------------------------------------------- #
# Kernel
# --------------------------------------------------------------------------- #
def _mlp_kernel(x_ref,
                w1_ref, b1_ref,
                w2_ref, b2_ref,
                w3_ref, b3_ref,
                w4_ref, b4_ref,
                w5_ref, b5_ref,
                w6_ref, b6_ref,
                logits_ref, probs_ref):
    h = x_ref[...]                                   # bf16 activation stream

    def layer(h, w_ref, b_ref):
        # bf16 operands -> MXU fast path; f32 accumulation; BN-shift + ReLU in
        # f32; result kept bf16 so the live intermediate stays half-width.
        y = jnp.dot(h, w_ref[...], preferred_element_type=jnp.float32)
        return jnp.maximum(y + b_ref[...], 0.0).astype(jnp.bfloat16)

    h = layer(h, w1_ref, b1_ref)
    h = layer(h, w2_ref, b2_ref)
    h = layer(h, w3_ref, b3_ref)
    h = layer(h, w4_ref, b4_ref)
    h = layer(h, w5_ref, b5_ref)

    # Final linear.  w6 is zero-padded to 128 output lanes; the padded bias
    # columns hold -1e30 so the row-wise softmax over all 128 lanes is exact
    # for the real classes (exp underflows to 0 on the pad lanes).
    logits = jnp.dot(h, w6_ref[...],
                     preferred_element_type=jnp.float32) + b6_ref[...]
    logits_ref[...] = logits.astype(logits_ref.dtype)   # lane-dense bf16 store

    # Numerically stable softmax along dim=1; divide via EUP approx reciprocal.
    m = jnp.max(logits, axis=1, keepdims=True)
    e = jnp.exp(logits - m)
    denom = jnp.sum(e, axis=1, keepdims=True)
    probs_ref[...] = (e * pl.reciprocal(denom, approx=True)).astype(probs_ref.dtype)


# --------------------------------------------------------------------------- #
# Parameter construction (same shapes as the PyTorch module, eval-mode BN)
# --------------------------------------------------------------------------- #
def make_params(key, num_classes=10, e=16):
    """Deterministic synthetic parameters mirroring the PyTorch module."""
    if num_classes == 10:
        net_dims = num_classes * np.array([e, e, e / 2, e / 4, e / 8, e / 16, 1], dtype=int)
    else:
        net_dims = num_classes * np.array([e, e / 10, e / 20, e / 40, e / 80, e / 160, 1], dtype=int)
    net_dims = [int(d) for d in net_dims]

    keys = iter(jax.random.split(key, 32))
    params = {}
    # Linear weights: PyTorch stores (out, in); we store the transpose (in, out).
    for l in range(1, 7):
        din, dout = net_dims[l - 1], net_dims[l]
        bound = 1.0 / np.sqrt(din)
        params[f"w{l}"] = jax.random.uniform(next(keys), (din, dout), jnp.float32,
                                             -bound, bound)
    # BatchNorm1d (eval mode): fold gamma/beta/running stats into scale & shift.
    eps = 1e-5
    for l in range(1, 6):
        dout = net_dims[l]
        gamma = 1.0 + 0.1 * jax.random.normal(next(keys), (dout,), jnp.float32)
        beta = 0.1 * jax.random.normal(next(keys), (dout,), jnp.float32)
        rmean = 0.05 * jax.random.normal(next(keys), (dout,), jnp.float32)
        rvar = jnp.abs(1.0 + 0.1 * jax.random.normal(next(keys), (dout,), jnp.float32))
        scale = gamma / jnp.sqrt(rvar + eps)
        shift = beta - rmean * scale
        params[f"s{l}"] = scale.reshape(1, dout)
        params[f"b{l}"] = shift.reshape(1, dout)
    # final bias
    bound = 1.0 / np.sqrt(net_dims[5])
    params["b6"] = jax.random.uniform(next(keys), (1, net_dims[6]), jnp.float32,
                                      -bound, bound)
    return params, net_dims


def prepare_kernel_params(params, net_dims):
    """Fold BN scale into weights, pad the classifier to 128 lanes, cast to bf16."""
    kp = {}
    for l in range(1, 6):
        w_folded = params[f"w{l}"] * params[f"s{l}"]        # (din, dout) * (1, dout)
        kp[f"w{l}"] = w_folded.astype(jnp.bfloat16)
        kp[f"b{l}"] = params[f"b{l}"]                       # additive shift, f32
    c = net_dims[6]
    padc = _round_up(max(c, LANE), LANE)
    w6 = params["w6"]
    w6p = jnp.zeros((w6.shape[0], padc), jnp.float32).at[:, :c].set(w6)
    b6p = jnp.full((1, padc), -1e30, jnp.float32).at[:, :c].set(params["b6"])
    kp["w6"] = w6p.astype(jnp.bfloat16)
    kp["b6"] = b6p
    return kp


# --------------------------------------------------------------------------- #
# Forward pass
# --------------------------------------------------------------------------- #
def _choose_tb(B):
    # Big tiles amortize the ~0.35us/step overhead; multiple of 16 for bf16.
    tb = min(2048, _round_up(max(B, SUB), SUB))
    # Guarantee >= 2 grid steps whenever the batch allows it: lets the pipeline
    # overlap DMA with compute and lets v7x shard the "parallel" batch axis
    # across both TensorCores.
    if B > SUB and pl.cdiv(B, tb) < 2:
        tb = _round_up(pl.cdiv(B, 2), SUB)
    return tb


@functools.partial(jax.jit, static_argnums=(2,))
def mlp_forward(x, kparams, num_classes):
    B = x.shape[0]
    # == x.view(x.size(0), -1); bf16 stream halves the input HBM read.
    x2d = x.reshape(B, -1).astype(jnp.bfloat16)
    D = x2d.shape[1]
    padc = kparams["w6"].shape[1]                   # 128-lane padded classes

    TB = _choose_tb(B)
    grid = (pl.cdiv(B, TB),)

    args = [x2d]
    in_specs = [pl.BlockSpec((TB, D), lambda i: (i, 0))]
    for l in range(1, 7):
        w = kparams[f"w{l}"]
        b = kparams[f"b{l}"]
        args += [w, b]
        # Weights / shifts stay VMEM-resident: full-array blocks, constant map.
        in_specs.append(pl.BlockSpec(w.shape, lambda i: (0, 0)))
        in_specs.append(pl.BlockSpec(b.shape, lambda i: (0, 0)))

    out_spec = pl.BlockSpec((TB, padc), lambda i: (i, 0))
    logits_p, probs_p = pl.pallas_call(
        _mlp_kernel,
        grid=grid,
        in_specs=in_specs,
        out_specs=(out_spec, out_spec),
        out_shape=(
            jax.ShapeDtypeStruct((B, padc), jnp.bfloat16),  # bf16 writeback:
            jax.ShapeDtypeStruct((B, padc), jnp.bfloat16),  # 4x less HBM out
        ),
        compiler_params=pltpu.CompilerParams(
            dimension_semantics=("parallel",),
            vmem_limit_bytes=32 * 1024 * 1024,
        ),
    )(*args)

    logits = logits_p[:, :num_classes].astype(jnp.float32)
    probs = probs_p[:, :num_classes].astype(jnp.float32)
    preds = jnp.argmax(logits, axis=1)              # cheap XLA op, not in-kernel
    return {"logits": logits, "probs": probs, "preds": preds}


# --------------------------------------------------------------------------- #
# Pure-JAX reference (f32) for a correctness sanity check
# --------------------------------------------------------------------------- #
def _reference(x, params):
    out = x.reshape(x.shape[0], -1).astype(jnp.float32)
    for l in range(1, 6):
        out = (out @ params[f"w{l}"]) * params[f"s{l}"] + params[f"b{l}"]
        out = jnp.maximum(out, 0.0)
    logits = out @ params["w6"] + params["b6"]
    probs = jax.nn.softmax(logits, axis=1)
    preds = jnp.argmax(probs, axis=1)
    return logits, probs, preds


if __name__ == "__main__":
    key = jax.random.PRNGKey(0)
    kp, kx = jax.random.split(key)

    num_classes, e = 10, 16          # net_dims = [160, 160, 80, 40, 20, 10, 10]
    params, net_dims = make_params(kp, num_classes=num_classes, e=e)
    kparams = prepare_kernel_params(params, net_dims)

    # input gets flattened to (B, net_dims[0]) by x.view(x.size(0), -1)
    x = jax.random.normal(kx, (2, 4, 40), jnp.float32)   # 4*40 == 160 == net_dims[0]

    net = mlp_forward(x, kparams, num_classes)
    jax.block_until_ready(net)

    ref_logits, ref_probs, ref_preds = _reference(x, params)

    # bf16 matmul operands + bf16 output stores -> loosened tolerances vs f32 ref.
    np.testing.assert_allclose(np.asarray(net["logits"]), np.asarray(ref_logits),
                               rtol=3e-2, atol=3e-2)
    np.testing.assert_allclose(np.asarray(net["probs"]), np.asarray(ref_probs),
                               rtol=3e-2, atol=3e-2)
    # preds must match wherever the reference top-2 margin is not razor thin.
    ref_sorted = np.sort(np.asarray(ref_logits), axis=1)
    safe = (ref_sorted[:, -1] - ref_sorted[:, -2]) > 0.05
    assert np.array_equal(np.asarray(net["preds"])[safe], np.asarray(ref_preds)[safe])

    assert net["logits"].shape == (2, num_classes)
    assert net["probs"].shape == (2, num_classes)
    assert net["preds"].shape == (2,)

    print("KERNEL_OK")
</pallas_src>

<mosaic_0001>
module attributes {stable_mosaic.version = 11 : i64} {
  func.func @_mlp_kernel(%arg0: i32, %arg1: memref<16x160xbf16, #tpu.memory_space<vmem>>, %arg2: memref<160x160xbf16, #tpu.memory_space<vmem>>, %arg3: memref<1x160xf32, #tpu.memory_space<vmem>>, %arg4: memref<160x80xbf16, #tpu.memory_space<vmem>>, %arg5: memref<1x80xf32, #tpu.memory_space<vmem>>, %arg6: memref<80x40xbf16, #tpu.memory_space<vmem>>, %arg7: memref<1x40xf32, #tpu.memory_space<vmem>>, %arg8: memref<40x20xbf16, #tpu.memory_space<vmem>>, %arg9: memref<1x20xf32, #tpu.memory_space<vmem>>, %arg10: memref<20x10xbf16, #tpu.memory_space<vmem>>, %arg11: memref<1x10xf32, #tpu.memory_space<vmem>>, %arg12: memref<10x128xbf16, #tpu.memory_space<vmem>>, %arg13: memref<1x128xf32, #tpu.memory_space<vmem>>, %arg14: memref<16x128xbf16, #tpu.memory_space<vmem>>, %arg15: memref<16x128xbf16, #tpu.memory_space<vmem>>) attributes {dimension_semantics = [#tpu.dimension_semantics<parallel>], iteration_bounds = array<i64: 1>, scalar_prefetch = 0 : i64, scratch_operands = 0 : i64, tpu.core_type = #tpu.core_type<tc>, window_params = [{transform_indices = @transform_0, window_bounds = array<i64: 16, 160>}, {pipeline_mode = #tpu.pipeline_mode<synchronous>, transform_indices = @transform_1, window_bounds = array<i64: 160, 160>}, {pipeline_mode = #tpu.pipeline_mode<synchronous>, transform_indices = @transform_2, window_bounds = array<i64: 1, 160>}, {pipeline_mode = #tpu.pipeline_mode<synchronous>, transform_indices = @transform_3, window_bounds = array<i64: 160, 80>}, {pipeline_mode = #tpu.pipeline_mode<synchronous>, transform_indices = @transform_4, window_bounds = array<i64: 1, 80>}, {pipeline_mode = #tpu.pipeline_mode<synchronous>, transform_indices = @transform_5, window_bounds = array<i64: 80, 40>}, {pipeline_mode = #tpu.pipeline_mode<synchronous>, transform_indices = @transform_6, window_bounds = array<i64: 1, 40>}, {pipeline_mode = #tpu.pipeline_mode<synchronous>, transform_indices = @transform_7, window_bounds = array<i64: 40, 20>}, {pipeline_mode = #tpu.pipeline_mode<synchronous>, transform_indices = @transform_8, window_bounds = array<i64: 1, 20>}, {pipeline_mode = #tpu.pipeline_mode<synchronous>, transform_indices = @transform_9, window_bounds = array<i64: 20, 10>}, {pipeline_mode = #tpu.pipeline_mode<synchronous>, transform_indices = @transform_10, window_bounds = array<i64: 1, 10>}, {pipeline_mode = #tpu.pipeline_mode<synchronous>, transform_indices = @transform_11, window_bounds = array<i64: 10, 128>}, {pipeline_mode = #tpu.pipeline_mode<synchronous>, transform_indices = @transform_12, window_bounds = array<i64: 1, 128>}, {transform_indices = @transform_13, window_bounds = array<i64: 16, 128>}, {transform_indices = @transform_14, window_bounds = array<i64: 16, 128>}]} {
    %c0 = arith.constant 0 : index
    %c0_0 = arith.constant 0 : index
    %0 = vector.load %arg1[%c0, %c0_0] : memref<16x160xbf16, #tpu.memory_space<vmem>>, vector<16x160xbf16>
    %c0_1 = arith.constant 0 : index
    %c0_2 = arith.constant 0 : index
    %1 = vector.load %arg2[%c0_1, %c0_2] : memref<160x160xbf16, #tpu.memory_space<vmem>>, vector<160x160xbf16>
    %cst = arith.constant dense<0.000000e+00> : vector<16x160xf32>
    %2 = tpu.matmul %0, %1, %cst {dimension_numbers = #tpu.dot_dimension_numbers<[1], [0], [0], [1], [0, 0, 1, 1], [], []>} : vector<16x160xbf16>, vector<160x160xbf16>, vector<16x160xf32> -> vector<16x160xf32>
    %c0_3 = arith.constant 0 : index
    %c0_4 = arith.constant 0 : index
    %3 = vector.load %arg3[%c0_3, %c0_4] : memref<1x160xf32, #tpu.memory_space<vmem>>, vector<1x160xf32>
    %4 = vector.broadcast %3 : vector<1x160xf32> to vector<16x160xf32>
    %5 = arith.addf %2, %4 : vector<16x160xf32>
    %cst_5 = arith.constant 0.000000e+00 : f32
    %6 = vector.broadcast %cst_5 : f32 to vector<16x160xf32>
    %7 = arith.maximumf %5, %6 : vector<16x160xf32>
    %8 = arith.truncf %7 : vector<16x160xf32> to vector<16x160xbf16>
    %c0_6 = arith.constant 0 : index
    %c0_7 = arith.constant 0 : index
    %9 = vector.load %arg4[%c0_6, %c0_7] : memref<160x80xbf16, #tpu.memory_space<vmem>>, vector<160x80xbf16>
    %cst_8 = arith.constant dense<0.000000e+00> : vector<16x80xf32>
    %10 = tpu.matmul %8, %9, %cst_8 {dimension_numbers = #tpu.dot_dimension_numbers<[1], [0], [0], [1], [0, 0, 1, 1], [], []>} : vector<16x160xbf16>, vector<160x80xbf16>, vector<16x80xf32> -> vector<16x80xf32>
    %c0_9 = arith.constant 0 : index
    %c0_10 = arith.constant 0 : index
    %11 = vector.load %arg5[%c0_9, %c0_10] : memref<1x80xf32, #tpu.memory_space<vmem>>, vector<1x80xf32>
    %12 = vector.broadcast %11 : vector<1x80xf32> to vector<16x80xf32>
    %13 = arith.addf %10, %12 : vector<16x80xf32>
    %cst_11 = arith.constant 0.000000e+00 : f32
    %14 = vector.broadcast %cst_11 : f32 to vector<16x80xf32>
    %15 = arith.maximumf %13, %14 : vector<16x80xf32>
    %16 = arith.truncf %15 : vector<16x80xf32> to vector<16x80xbf16>
    %c0_12 = arith.constant 0 : index
    %c0_13 = arith.constant 0 : index
    %17 = vector.load %arg6[%c0_12, %c0_13] : memref<80x40xbf16, #tpu.memory_space<vmem>>, vector<80x40xbf16>
    %cst_14 = arith.constant dense<0.000000e+00> : vector<16x40xf32>
    %18 = tpu.matmul %16, %17, %cst_14 {dimension_numbers = #tpu.dot_dimension_numbers<[1], [0], [0], [1], [0, 0, 1, 1], [], []>} : vector<16x80xbf16>, vector<80x40xbf16>, vector<16x40xf32> -> vector<16x40xf32>
    %c0_15 = arith.constant 0 : index
    %c0_16 = arith.constant 0 : index
    %19 = vector.load %arg7[%c0_15, %c0_16] : memref<1x40xf32, #tpu.memory_space<vmem>>, vector<1x40xf32>
    %20 = vector.broadcast %19 : vector<1x40xf32> to vector<16x40xf32>
    %21 = arith.addf %18, %20 : vector<16x40xf32>
    %cst_17 = arith.constant 0.000000e+00 : f32
    %22 = vector.broadcast %cst_17 : f32 to vector<16x40xf32>
    %23 = arith.maximumf %21, %22 : vector<16x40xf32>
    %24 = arith.truncf %23 : vector<16x40xf32> to vector<16x40xbf16>
    %c0_18 = arith.constant 0 : index
    %c0_19 = arith.constant 0 : index
    %25 = vector.load %arg8[%c0_18, %c0_19] : memref<40x20xbf16, #tpu.memory_space<vmem>>, vector<40x20xbf16>
    %cst_20 = arith.constant dense<0.000000e+00> : vector<16x20xf32>
    %26 = tpu.matmul %24, %25, %cst_20 {dimension_numbers = #tpu.dot_dimension_numbers<[1], [0], [0], [1], [0, 0, 1, 1], [], []>} : vector<16x40xbf16>, vector<40x20xbf16>, vector<16x20xf32> -> vector<16x20xf32>
    %c0_21 = arith.constant 0 : index
    %c0_22 = arith.constant 0 : index
    %27 = vector.load %arg9[%c0_21, %c0_22] : memref<1x20xf32, #tpu.memory_space<vmem>>, vector<1x20xf32>
    %28 = vector.broadcast %27 : vector<1x20xf32> to vector<16x20xf32>
    %29 = arith.addf %26, %28 : vector<16x20xf32>
    %cst_23 = arith.constant 0.000000e+00 : f32
    %30 = vector.broadcast %cst_23 : f32 to vector<16x20xf32>
    %31 = arith.maximumf %29, %30 : vector<16x20xf32>
    %32 = arith.truncf %31 : vector<16x20xf32> to vector<16x20xbf16>
    %c0_24 = arith.constant 0 : index
    %c0_25 = arith.constant 0 : index
    %33 = vector.load %arg10[%c0_24, %c0_25] : memref<20x10xbf16, #tpu.memory_space<vmem>>, vector<20x10xbf16>
    %cst_26 = arith.constant dense<0.000000e+00> : vector<16x10xf32>
    %34 = tpu.matmul %32, %33, %cst_26 {dimension_numbers = #tpu.dot_dimension_numbers<[1], [0], [0], [1], [0, 0, 1, 1], [], []>} : vector<16x20xbf16>, vector<20x10xbf16>, vector<16x10xf32> -> vector<16x10xf32>
    %c0_27 = arith.constant 0 : index
    %c0_28 = arith.constant 0 : index
    %35 = vector.load %arg11[%c0_27, %c0_28] : memref<1x10xf32, #tpu.memory_space<vmem>>, vector<1x10xf32>
    %36 = vector.broadcast %35 : vector<1x10xf32> to vector<16x10xf32>
    %37 = arith.addf %34, %36 : vector<16x10xf32>
    %cst_29 = arith.constant 0.000000e+00 : f32
    %38 = vector.broadcast %cst_29 : f32 to vector<16x10xf32>
    %39 = arith.maximumf %37, %38 : vector<16x10xf32>
    %40 = arith.truncf %39 : vector<16x10xf32> to vector<16x10xbf16>
    %c0_30 = arith.constant 0 : index
    %c0_31 = arith.constant 0 : index
    %41 = vector.load %arg12[%c0_30, %c0_31] : memref<10x128xbf16, #tpu.memory_space<vmem>>, vector<10x128xbf16>
    %cst_32 = arith.constant dense<0.000000e+00> : vector<16x128xf32>
    %42 = tpu.matmul %40, %41, %cst_32 {dimension_numbers = #tpu.dot_dimension_numbers<[1], [0], [0], [1], [0, 0, 1, 1], [], []>} : vector<16x10xbf16>, vector<10x128xbf16>, vector<16x128xf32> -> vector<16x128xf32>
    %c0_33 = arith.constant 0 : index
    %c0_34 = arith.constant 0 : index
    %43 = vector.load %arg13[%c0_33, %c0_34] : memref<1x128xf32, #tpu.memory_space<vmem>>, vector<1x128xf32>
    %44 = vector.broadcast %43 : vector<1x128xf32> to vector<16x128xf32>
    %45 = arith.addf %42, %44 : vector<16x128xf32>
    %46 = arith.truncf %45 : vector<16x128xf32> to vector<16x128xbf16>
    %c0_35 = arith.constant 0 : index
    %c0_36 = arith.constant 0 : index
    %47 = vector.load %arg14[%c0_35, %c0_36] : memref<16x128xbf16, #tpu.memory_space<vmem>>, vector<16x128xbf16>
    tpu.vector_store %arg14[%c0_35, %c0_36], %46 {strides = array<i32>} : memref<16x128xbf16, #tpu.memory_space<vmem>>, vector<16x128xbf16>,
    %cst_37 = arith.constant dense<0xFF800000> : vector<16xf32>
    %48 = vector.multi_reduction <maximumf>, %45, %cst_37 [1] : vector<16x128xf32> to vector<16xf32>
    %49 = vector.shape_cast %48 : vector<16xf32> to vector<16x1xf32>
    %50 = vector.broadcast %49 : vector<16x1xf32> to vector<16x128xf32>
    %51 = arith.subf %45, %50 : vector<16x128xf32>
    %52 = math.exp %51 : vector<16x128xf32>
    %cst_38 = arith.constant dense<0.000000e+00> : vector<16xf32>
    %53 = vector.multi_reduction <add>, %52, %cst_38 [1] : vector<16x128xf32> to vector<16xf32>
    %54 = vector.shape_cast %53 : vector<16xf32> to vector<16x1xf32>
    %55 = tpu.reciprocal %54 {approx = true} : vector<16x1xf32> -> vector<16x1xf32>
    %56 = vector.broadcast %55 : vector<16x1xf32> to vector<16x128xf32>
    %57 = arith.mulf %52, %56 : vector<16x128xf32>
    %58 = arith.truncf %57 : vector<16x128xf32> to vector<16x128xbf16>
    %c0_39 = arith.constant 0 : index
    %c0_40 = arith.constant 0 : index
    %59 = vector.load %arg15[%c0_39, %c0_40] : memref<16x128xbf16, #tpu.memory_space<vmem>>, vector<16x128xbf16>
    tpu.vector_store %arg15[%c0_39, %c0_40], %58 {strides = array<i32>} : memref<16x128xbf16, #tpu.memory_space<vmem>>, vector<16x128xbf16>,
    return
  }
  func.func @transform_0(%arg0: i32) -> (i32, i32) {
    %c0_i32 = arith.constant 0 : i32
    %c0_i32_0 = arith.constant 0 : i32
    return %arg0, %c0_i32 : i32, i32
  }
  func.func @transform_1(%arg0: i32) -> (i32, i32) {
    %c0_i32 = arith.constant 0 : i32
    %c0_i32_0 = arith.constant 0 : i32
    %c0_i32_1 = arith.constant 0 : i32
    return %c0_i32, %c0_i32_0 : i32, i32
  }
  func.func @transform_2(%arg0: i32) -> (i32, i32) {
    %c0_i32 = arith.constant 0 : i32
    %c0_i32_0 = arith.constant 0 : i32
    %c0_i32_1 = arith.constant 0 : i32
    return %c0_i32, %c0_i32_0 : i32, i32
  }
  func.func @transform_3(%arg0: i32) -> (i32, i32) {
    %c0_i32 = arith.constant 0 : i32
    %c0_i32_0 = arith.constant 0 : i32
    %c0_i32_1 = arith.constant 0 : i32
    return %c0_i32, %c0_i32_0 : i32, i32
  }
  func.func @transform_4(%arg0: i32) -> (i32, i32) {
    %c0_i32 = arith.constant 0 : i32
    %c0_i32_0 = arith.constant 0 : i32
    %c0_i32_1 = arith.constant 0 : i32
    return %c0_i32, %c0_i32_0 : i32, i32
  }
  func.func @transform_5(%arg0: i32) -> (i32, i32) {
    %c0_i32 = arith.constant 0 : i32
    %c0_i32_0 = arith.constant 0 : i32
    %c0_i32_1 = arith.constant 0 : i32
    return %c0_i32, %c0_i32_0 : i32, i32
  }
  func.func @transform_6(%arg0: i32) -> (i32, i32) {
    %c0_i32 = arith.constant 0 : i32
    %c0_i32_0 = arith.constant 0 : i32
    %c0_i32_1 = arith.constant 0 : i32
    return %c0_i32, %c0_i32_0 : i32, i32
  }
  func.func @transform_7(%arg0: i32) -> (i32, i32) {
    %c0_i32 = arith.constant 0 : i32
    %c0_i32_0 = arith.constant 0 : i32
    %c0_i32_1 = arith.constant 0 : i32
    return %c0_i32, %c0_i32_0 : i32, i32
  }
  func.func @transform_8(%arg0: i32) -> (i32, i32) {
    %c0_i32 = arith.constant 0 : i32
    %c0_i32_0 = arith.constant 0 : i32
    %c0_i32_1 = arith.constant 0 : i32
    return %c0_i32, %c0_i32_0 : i32, i32
  }
  func.func @transform_9(%arg0: i32) -> (i32, i32) {
    %c0_i32 = arith.constant 0 : i32
    %c0_i32_0 = arith.constant 0 : i32
    %c0_i32_1 = arith.constant 0 : i32
    return %c0_i32, %c0_i32_0 : i32, i32
  }
  func.func @transform_10(%arg0: i32) -> (i32, i32) {
    %c0_i32 = arith.constant 0 : i32
    %c0_i32_0 = arith.constant 0 : i32
    %c0_i32_1 = arith.constant 0 : i32
    return %c0_i32, %c0_i32_0 : i32, i32
  }
  func.func @transform_11(%arg0: i32) -> (i32, i32) {
    %c0_i32 = arith.constant 0 : i32
    %c0_i32_0 = arith.constant 0 : i32
    %c0_i32_1 = arith.constant 0 : i32
    return %c0_i32, %c0_i32_0 : i32, i32
  }
  func.func @transform_12(%arg0: i32) -> (i32, i32) {
    %c0_i32 = arith.constant 0 : i32
    %c0_i32_0 = arith.constant 0 : i32
    %c0_i32_1 = arith.constant 0 : i32
    return %c0_i32, %c0_i32_0 : i32, i32
  }
  func.func @transform_13(%arg0: i32) -> (i32, i32) {
    %c0_i32 = arith.constant 0 : i32
    %c0_i32_0 = arith.constant 0 : i32
    return %arg0, %c0_i32 : i32, i32
  }
  func.func @transform_14(%arg0: i32) -> (i32, i32) {
    %c0_i32 = arith.constant 0 : i32
    %c0_i32_0 = arith.constant 0 : i32
    return %arg0, %c0_i32 : i32, i32
  }
}

</mosaic_0001>

<llo_original>
// kernel: mlp_forward.1
$region0: #{mlp_forward.1}
  #allocation0 [shape = 'u32[]', space=smem, size = 0x4, offset = 0x4, fixed_abs, tag = 'smem constant byte address 0x4 - core index']
  #allocation1 [shape = 'u32[144,128]{1,0:T(1,128)}', space=vmem, size = 0x12000, scoped, tag = 'internal scratch']
  %s0 = inlined_call_operand.vmem [shape: bf16[2,160], index: 0, kind: input, shape index: {}]
  %s1 = inlined_call_operand.hbm [shape: bf16[160,160], index: 1, kind: input, shape index: {}]
  %s2 = inlined_call_operand.vmem [shape: f32[1,160], index: 2, kind: input, shape index: {}]
  %s3 = inlined_call_operand.vmem [shape: bf16[160,80], index: 3, kind: input, shape index: {}]
  %s4 = inlined_call_operand.vmem [shape: f32[1,80], index: 4, kind: input, shape index: {}]
  %s5 = inlined_call_operand.vmem [shape: bf16[80,40], index: 5, kind: input, shape index: {}]
  %s6 = inlined_call_operand.vmem [shape: f32[1,40], index: 6, kind: input, shape index: {}]
  %s7 = inlined_call_operand.vmem [shape: bf16[40,20], index: 7, kind: input, shape index: {}]
  %s8 = inlined_call_operand.vmem [shape: f32[1,20], index: 8, kind: input, shape index: {}]
  %s9 = inlined_call_operand.vmem [shape: bf16[20,10], index: 9, kind: input, shape index: {}]
  %s10 = inlined_call_operand.vmem [shape: f32[1,10], index: 10, kind: input, shape index: {}]
  %s11 = inlined_call_operand.vmem [shape: bf16[10,128], index: 11, kind: input, shape index: {}]
  %s12 = inlined_call_operand.vmem [shape: f32[1,128], index: 12, kind: input, shape index: {}]
  %s13 = inlined_call_operand.vmem [shape: bf16[2,128], index: 13, kind: output, shape index: {0}]
  %s14 = inlined_call_operand.vmem [shape: bf16[2,128], index: 14, kind: output, shape index: {1}]
  %15 = xla_tuple %s13, %s14
  %s16 = sld [smem:[#allocation0]]
  $region134: #{mlp_forward.1} parent=0
    _
  %s18 = ssub.s32 1, %s16
  %s19 = scalar_select 0, %s18, %s16
  $region1: #{mlp_forward.1} parent=0
    #allocation2 [shape = 'u8[81920]{0}', space=vmem, size = 0x14000, scoped, tag = 'input window, operand 1, single buffered']
    #allocation3 [shape = 's32[1]{0}', space=sflag, size = 0x4, scoped, tag = 'scoped memory for mlp_forward.1']
    #allocation4 [shape = 'u8[4096]{0}', space=vmem, size = 0x1000, scoped, tag = 'output window, operand 0, single buffered']
    #allocation5 [shape = 'u8[4096]{0}', space=vmem, size = 0x1000, scoped, tag = 'output window, operand 1, single buffered']
    %20 = vsyncpa [#allocation3], 0
    // Predicated region
    $region2: #{mlp_forward.1} parent=1 // pred_check
      _
    $region3: #{mlp_forward.1} parent=1 // pred_check_branch
      %22 = sbr.rel (0) target = $region5
    $region4: #{mlp_forward.1} parent=1 // pred_region
      _
    $region5: #{mlp_forward.1} parent=1 // pred_fallthru
      _
    // Predicated region
    $region6: #{mlp_forward.1} parent=1 // pred_check
      _
    $region7: #{mlp_forward.1} parent=1 // pred_check_branch
      %24 = sbr.rel (0) target = $region9
    $region8: #{mlp_forward.1} parent=1 // pred_region
      %s26 = ssub.s32 2560, 2560
      %27 = vsyncadd [#allocation3], %s26
      %s28 = sshll.u32 [#allocation2], 4
      %s29 = int_to_ptr.vmem [resolvable:$true] %s28
      %34 = dma.hbm_to_vmem [thread:$0]  %s1, 2560, %s29, [#allocation3], 128, 128, 8
    $region9: #{mlp_forward.1} parent=1 // pred_fallthru
      _
    // Predicated region
    $region10: #{mlp_forward.1} parent=1 // pred_check
      _
    $region11: #{mlp_forward.1} parent=1 // pred_check_branch
      %36 = sbr.rel (0) target = $region13
    $region12: #{mlp_forward.1} parent=1 // pred_region
      _
    $region13: #{mlp_forward.1} parent=1 // pred_fallthru
      _
    // Predicated region
    $region14: #{mlp_forward.1} parent=1 // pred_check
      _
    $region15: #{mlp_forward.1} parent=1 // pred_check_branch
      %38 = sbr.rel (0) target = $region17
    $region16: #{mlp_forward.1} parent=1 // pred_region
      _
    $region17: #{mlp_forward.1} parent=1 // pred_fallthru
      _
    // Predicated region
    $region18: #{mlp_forward.1} parent=1 // pred_check
      _
    $region19: #{mlp_forward.1} parent=1 // pred_check_branch
      %40 = sbr.rel (0) target = $region21
    $region20: #{mlp_forward.1} parent=1 // pred_region
      _
    $region21: #{mlp_forward.1} parent=1 // pred_fallthru
      _
    // Predicated region
    $region22: #{mlp_forward.1} parent=1 // pred_check
      _
    $region23: #{mlp_forward.1} parent=1 // pred_check_branch
      %42 = sbr.rel (0) target = $region25
    $region24: #{mlp_forward.1} parent=1 // pred_region
      _
    $region25: #{mlp_forward.1} parent=1 // pred_fallthru
      _
    // Predicated region
    $region26: #{mlp_forward.1} parent=1 // pred_check
      _
    $region27: #{mlp_forward.1} parent=1 // pred_check_branch
      %44 = sbr.rel (0) target = $region29
    $region28: #{mlp_forward.1} parent=1 // pred_region
      _
    $region29: #{mlp_forward.1} parent=1 // pred_fallthru
      _
    // Predicated region
    $region30: #{mlp_forward.1} parent=1 // pred_check
      _
    $region31: #{mlp_forward.1} parent=1 // pred_check_branch
      %46 = sbr.rel (0) target = $region33
    $region32: #{mlp_forward.1} parent=1 // pred_region
      _
    $region33: #{mlp_forward.1} parent=1 // pred_fallthru
      _
    // Predicated region
    $region34: #{mlp_forward.1} parent=1 // pred_check
      _
    $region35: #{mlp_forward.1} parent=1 // pred_check_branch
      %48 = sbr.rel (0) target = $region37
    $region36: #{mlp_forward.1} parent=1 // pred_region
      _
    $region37: #{mlp_forward.1} parent=1 // pred_fallthru
      _
    // Predicated region
    $region38: #{mlp_forward.1} parent=1 // pred_check
      _
    $region39: #{mlp_forward.1} parent=1 // pred_check_branch
      %50 = sbr.rel (0) target = $region41
    $region40: #{mlp_forward.1} parent=1 // pred_region
      _
    $region41: #{mlp_forward.1} parent=1 // pred_fallthru
      _
    // Predicated region
    $region42: #{mlp_forward.1} parent=1 // pred_check
      _
    $region43: #{mlp_forward.1} parent=1 // pred_check_branch
      %52 = sbr.rel (0) target = $region45
    $region44: #{mlp_forward.1} parent=1 // pred_region
      _
    $region45: #{mlp_forward.1} parent=1 // pred_fallthru
      _
    // Predicated region
    $region46: #{mlp_forward.1} parent=1 // pred_check
      _
    $region47: #{mlp_forward.1} parent=1 // pred_check_branch
      %54 = sbr.rel (0) target = $region49
    $region48: #{mlp_forward.1} parent=1 // pred_region
      _
    $region49: #{mlp_forward.1} parent=1 // pred_fallthru
      _
    // Predicated region
    $region50: #{mlp_forward.1} parent=1 // pred_check
      _
    $region51: #{mlp_forward.1} parent=1 // pred_check_branch
      %56 = sbr.rel (0) target = $region53
    $region52: #{mlp_forward.1} parent=1 // pred_region
      _
    $region53: #{mlp_forward.1} parent=1 // pred_fallthru
      _
    // Predicated region
    $region54: #{mlp_forward.1} parent=1 // pred_check
      _
    $region55: #{mlp_forward.1} parent=1 // pred_check_branch
      %58 = sbr.rel (0) target = $region57
    $region56: #{mlp_forward.1} parent=1 // pred_region
      %59 = dma.done [#allocation3], 2560
    $region57: #{mlp_forward.1} parent=1 // pred_fallthru
      _
    %v61 = vld [vmem:[%s0] sm:$0x3]
    %v62 = vld [vmem:[%s0 + $0x2] sm:$0x3]
    %v63 = vld [vmem:[%s0 + $0x4] sm:$0x3]
    %v64 = vld [vmem:[%s0 + $0x6] sm:$0x3]
    %v65 = vld [vmem:[%s0 + $0x8] sm:$0x3]
    %v66 = vld [vmem:[%s0 + $0xa] sm:$0x3]
    %v67 = vld [vmem:[%s0 + $0xc] sm:$0x3]
    %v68 = vld [vmem:[%s0 + $0xe] sm:$0x3]
    %v69 = vld [vmem:[#allocation2] sm:$0xff]
    %v70 = vld [vmem:[#allocation2 + $0x8] sm:$0xff]
    %v71 = vld [vmem:[#allocation2 + $0x10] sm:$0xff]
    %v72 = vld [vmem:[#allocation2 + $0x18] sm:$0xff]
    %v73 = vld [vmem:[#allocation2 + $0x20] sm:$0xff]
    %v74 = vld [vmem:[#allocation2 + $0x28] sm:$0xff]
    %v75 = vld [vmem:[#allocation2 + $0x30] sm:$0xff]
    %v76 = vld [vmem:[#allocation2 + $0x38] sm:$0xff]
    %v77 = vld [vmem:[#allocation2 + $0x40] sm:$0xff]
    %v78 = vld [vmem:[#allocation2 + $0x48] sm:$0xff]
    %v79 = vld [vmem:[#allocation2 + $0x50] sm:$0xff]
    %v80 = vld [vmem:[#allocation2 + $0x58] sm:$0xff]
    %v81 = vld [vmem:[#allocation2 + $0x60] sm:$0xff]
    %v82 = vld [vmem:[#allocation2 + $0x68] sm:$0xff]
    %v83 = vld [vmem:[#allocation2 + $0x70] sm:$0xff]
    %v84 = vld [vmem:[#allocation2 + $0x78] sm:$0xff]
    %v85 = vld [vmem:[#allocation2 + $0x80] sm:$0xff]
    %v86 = vld [vmem:[#allocation2 + $0x88] sm:$0xff]
    %v87 = vld [vmem:[#allocation2 + $0x90] sm:$0xff]
    %v88 = vld [vmem:[#allocation2 + $0x98] sm:$0xff]
    %v89 = vld [vmem:[%s2] sm:$0x3]
    %v91 = vlaneseq
    %v92 = vshrl.u32 %v91, 7
    %v93 = vsub.s32 0, %v92
    %v94 = vrot.slane %v89, %v93
    %v95 = vlaneseq
    %v96 = vshrl.u32 %v95, 7
    %v97 = vsub.s32 1, %v96
    %v98 = vrot.slane %v89, %v97
    %v109 = vcombine.low %v61, %v62
    %v110 = vcombine.low %v63, %v64
    %v111 = vcombine.low %v65, %v66
    %v112 = vcombine.low %v67, %v68
    %v114 = vunpack.c.l.s4 1966171168
    %v115 = vunpack.c.0.s8 %v114
    %v116 = vlaneseq
    %v117 = vshrl.u32 %v116, 7
    %v118 = vsub.s32 %v115, %v117
    %v119 = vrot.slane %v109, %v118
    %v121 = vunpack.c.l.s4 1966171168
    %v122 = vunpack.c.0.s8 %v121
    %v123 = vlaneseq
    %v124 = vshrl.u32 %v123, 7
    %v125 = vsub.s32 %v122, %v124
    %v126 = vrot.slane %v110, %v125
    %v128 = vunpack.c.l.s4 1966171168
    %v129 = vunpack.c.0.s8 %v128
    %v130 = vlaneseq
    %v131 = vshrl.u32 %v130, 7
    %v132 = vsub.s32 %v129, %v131
    %v133 = vrot.slane %v111, %v132
    %v135 = vunpack.c.l.s4 1966171168
    %v136 = vunpack.c.0.s8 %v135
    %v137 = vlaneseq
    %v138 = vshrl.u32 %v137, 7
    %v139 = vsub.s32 %v136, %v138
    %v140 = vrot.slane %v112, %v139
    %v141 = vcombine.low %v119, %v126
    %v142 = vcombine.high %v119, %v126
    %v143 = vcombine.low %v133, %v140
    %v144 = vcombine.high %v133, %v140
    %v146 = vunpack.c.l.s4 1966171168
    %v147 = vunpack.c.0.s8 %v146
    %v148 = vlaneseq
    %v149 = vshrl.u32 %v148, 7
    %v150 = vsub.s32 %v147, %v149
    %v151 = vrot.slane %v141, %v150
    %v153 = vunpack.c.l.s4 1966171168
    %v154 = vunpack.c.0.s8 %v153
    %v155 = vlaneseq
    %v156 = vshrl.u32 %v155, 7
    %v157 = vsub.s32 %v154, %v156
    %v158 = vrot.slane %v142, %v157
    %v160 = vunpack.c.l.s4 1966171168
    %v161 = vunpack.c.0.s8 %v160
    %v162 = vlaneseq
    %v163 = vshrl.u32 %v162, 7
    %v164 = vsub.s32 %v161, %v163
    %v165 = vrot.slane %v143, %v164
    %v167 = vunpack.c.l.s4 1966171168
    %v168 = vunpack.c.0.s8 %v167
    %v169 = vlaneseq
    %v170 = vshrl.u32 %v169, 7
    %v171 = vsub.s32 %v168, %v170
    %v172 = vrot.slane %v144, %v171
    %v173 = vcombine.low %v151, %v165
    %v174 = vcombine.low %v158, %v172
    %v196 = vunpack.c.l.b16 %v69
    %v197 = vunpack.c.h.b16 %v69
    %v198 = vunpack.c.l.b16 %v70
    %v199 = vunpack.c.h.b16 %v70
    %v200 = vunpack.c.l.b16 %v71
    %v201 = vunpack.c.h.b16 %v71
    %v202 = vunpack.c.l.b16 %v72
    %v203 = vunpack.c.h.b16 %v72
    %v204 = vunpack.c.l.b16 %v73
    %v205 = vunpack.c.h.b16 %v73
    %v206 = vunpack.c.l.b16 %v74
    %v207 = vunpack.c.h.b16 %v74
    %v208 = vunpack.c.l.b16 %v75
    %v209 = vunpack.c.h.b16 %v75
    %v210 = vunpack.c.l.b16 %v76
    %v211 = vunpack.c.h.b16 %v76
    %v212 = vunpack.c.l.b16 %v77
    %v213 = vunpack.c.h.b16 %v77
    %v214 = vunpack.c.l.b16 %v78
    %v215 = vunpack.c.h.b16 %v78
    %v216 = vunpack.c.l.b16 %v79
    %v217 = vunpack.c.h.b16 %v79
    %v218 = vunpack.c.l.b16 %v80
    %v219 = vunpack.c.h.b16 %v80
    %v220 = vunpack.c.l.b16 %v81
    %v221 = vunpack.c.h.b16 %v81
    %v222 = vunpack.c.l.b16 %v82
    %v223 = vunpack.c.h.b16 %v82
    %v224 = vunpack.c.l.b16 %v83
    %v225 = vunpack.c.h.b16 %v83
    %v226 = vunpack.c.l.b16 %v84
    %v227 = vunpack.c.h.b16 %v84
    %v228 = vunpack.c.l.b16 %v85
    %v229 = vunpack.c.h.b16 %v85
    %v230 = vunpack.c.l.b16 %v86
    %v231 = vunpack.c.h.b16 %v86
    %v232 = vunpack.c.l.b16 %v87
    %v233 = vunpack.c.h.b16 %v87
    %v234 = vunpack.c.l.b16 %v88
    %v235 = vunpack.c.h.b16 %v88
    %v236 = vpack.c.b16 %v198, %v196
    %v237 = vpack.c.b16 %v199, %v197
    %v238 = vpack.c.b16 %v202, %v200
    %v239 = vpack.c.b16 %v203, %v201
    %v240 = vpack.c.b16 %v206, %v204
    %v241 = vpack.c.b16 %v207, %v205
    %v242 = vpack.c.b16 %v210, %v208
    %v243 = vpack.c.b16 %v211, %v209
    %v244 = vpack.c.b16 %v214, %v212
    %v245 = vpack.c.b16 %v215, %v213
    %v246 = vpack.c.b16 %v218, %v216
    %v247 = vpack.c.b16 %v219, %v217
    %v248 = vpack.c.b16 %v222, %v220
    %v249 = vpack.c.b16 %v223, %v221
    %v250 = vpack.c.b16 %v226, %v224
    %v251 = vpack.c.b16 %v227, %v225
    %v252 = vpack.c.b16 %v230, %v228
    %v253 = vpack.c.b16 %v231, %v229
    %v254 = vpack.c.b16 %v234, %v232
    %v255 = vpack.c.b16 %v235, %v233
    %vm276 = vcmask 261120
    %v278 = vsel %vm276, %v174, 0
    %280 = vmatprep.subr.bf16.mxu0 %v237
    %281 = vmatpush1.bf16.msra.mxu0 %v236
    %282 = vmatprep.subr.bf16.mxu0 %v239
    %283 = vmatpush1.bf16.msra.mxu0 %v238
    %284 = vmatprep.subr.bf16.mxu0 %v241
    %285 = vmatpush1.bf16.msra.mxu0 %v240
    %286 = vmatprep.subr.bf16.mxu0 %v243
    %287 = vmatpush1.bf16.msra.mxu0 %v242
    %288 = vmatprep.subr.bf16.mxu0 %v245
    %289 = vmatpush1.bf16.msra.mxu0 %v244
    %290 = vmatprep.subr.bf16.mxu0 %v247
    %291 = vmatpush1.bf16.msra.mxu0 %v246
    %292 = vmatprep.subr.bf16.mxu0 %v249
    %293 = vmatpush1.bf16.msra.mxu0 %v248
    %294 = vmatprep.subr.bf16.mxu0 %v251
    %295 = vmatpush1.bf16.msra.mxu0 %v250
    %296 = vmatprep.subr.bf16.mxu0 %v253
    %297 = vmatpush1.bf16.msra.mxu0 %v252
    %298 = vmatprep.subr.bf16.mxu0 %v255
    %299 = vmatpush1.bf16.msra.mxu0 %v254
    %300 = vmatprep.subr.bf16.mxu0 0
    %301 = vmatpush1.bf16.msra.mxu0 0
    %302 = vmatprep.subr.bf16.mxu0 0
    %303 = vmatpush1.bf16.msra.mxu0 0
    %304 = vmatprep.subr.bf16.mxu0 0
    %305 = vmatpush1.bf16.msra.mxu0 0
    %306 = vmatprep.subr.bf16.mxu0 0
    %307 = vmatpush1.bf16.msra.mxu0 0
    %308 = vmatprep.subr.bf16.mxu0 0
    %309 = vmatpush1.bf16.msra.mxu0 0
    %310 = vmatprep.subr.bf16.mxu0 0
    %311 = vmatpush1.bf16.msra.mxu0 0
    %312 = vmatprep.mubr.bf16.mxu0 %v278
    %313 = vmatmul.mubr.bf16.gmra.mrb[0].mxu0 %v173
    %v314 = vpop.f32.mrb[0].mxu0
    %v315 = vadd.f32 %v94, %v314
    %v316 = vpop.f32.mrb[0].mxu0
    %v317 = vadd.f32 %v98, %v316
    %v318 = vpop.f32.mrb[0].mxu0
    %v319 = vadd.f32 %v94, %v318
    %v320 = vpop.f32.mrb[0].mxu0
    %v321 = vadd.f32 %v98, %v320
    %322 = vdwg.mxu0
    %v323 = vmax.f32 %v315, 0.0
    %v324 = vmax.f32 %v317, 0.0
    %v325 = vmax.f32 %v319, 0.0
    %v326 = vmax.f32 %v321, 0.0
    %v327 = vpack.c.bf16 %v325, %v323
    %v328 = vpack.c.bf16 %v326, %v324
    %v329 = vld [vmem:[%s3] sm:$0xf]
    %v330 = vld [vmem:[%s3 + $0x4] sm:$0xf]
    %v331 = vld [vmem:[%s3 + $0x8] sm:$0xf]
    %v332 = vld [vmem:[%s3 + $0xc] sm:$0xf]
    %v333 = vld [vmem:[%s3 + $0x10] sm:$0xf]
    %v334 = vld [vmem:[%s3 + $0x14] sm:$0xf]
    %v335 = vld [vmem:[%s3 + $0x18] sm:$0xf]
    %v336 = vld [vmem:[%s3 + $0x1c] sm:$0xf]
    %v337 = vld [vmem:[%s3 + $0x20] sm:$0xf]
    %v338 = vld [vmem:[%s3 + $0x24] sm:$0xf]
    %v339 = vld [vmem:[%s3 + $0x28] sm:$0xf]
    %v340 = vld [vmem:[%s3 + $0x2c] sm:$0xf]
    %v341 = vld [vmem:[%s3 + $0x30] sm:$0xf]
    %v342 = vld [vmem:[%s3 + $0x34] sm:$0xf]
    %v343 = vld [vmem:[%s3 + $0x38] sm:$0xf]
    %v344 = vld [vmem:[%s3 + $0x3c] sm:$0xf]
    %v345 = vld [vmem:[%s3 + $0x40] sm:$0xf]
    %v346 = vld [vmem:[%s3 + $0x44] sm:$0xf]
    %v347 = vld [vmem:[%s3 + $0x48] sm:$0xf]
    %v348 = vld [vmem:[%s3 + $0x4c] sm:$0xf]
    %v349 = vld [vmem:[%s4] sm:$0x1]
    %v351 = vlaneseq
    %v352 = vshrl.u32 %v351, 7
    %v353 = vsub.s32 0, %v352
    %v354 = vrot.slane %v349, %v353
    %v376 = vunpack.c.l.b16 %v329
    %v377 = vunpack.c.l.b16 %v330
    %v378 = vunpack.c.l.b16 %v331
    %v379 = vunpack.c.l.b16 %v332
    %v380 = vunpack.c.l.b16 %v333
    %v381 = vunpack.c.l.b16 %v334
    %v382 = vunpack.c.l.b16 %v335
    %v383 = vunpack.c.l.b16 %v336
    %v384 = vunpack.c.l.b16 %v337
    %v385 = vunpack.c.l.b16 %v338
    %v386 = vunpack.c.l.b16 %v339
    %v387 = vunpack.c.l.b16 %v340
    %v388 = vunpack.c.l.b16 %v341
    %v389 = vunpack.c.l.b16 %v342
    %v390 = vunpack.c.l.b16 %v343
    %v391 = vunpack.c.l.b16 %v344
    %v392 = vunpack.c.l.b16 %v345
    %v393 = vunpack.c.l.b16 %v346
    %v394 = vunpack.c.l.b16 %v347
    %v395 = vunpack.c.l.b16 %v348
    %v396 = vpack.c.b16 %v377, %v376
    %v397 = vpack.c.b16 %v379, %v378
    %v398 = vpack.c.b16 %v381, %v380
    %v399 = vpack.c.b16 %v383, %v382
    %v400 = vpack.c.b16 %v385, %v384
    %v401 = vpack.c.b16 %v387, %v386
    %v402 = vpack.c.b16 %v389, %v388
    %v403 = vpack.c.b16 %v391, %v390
    %v404 = vpack.c.b16 %v393, %v392
    %v405 = vpack.c.b16 %v395, %v394
    %v417 = vsel %vm276, %v328, 0
    %419 = vmatprep.subr.bf16.mxu0 0
    %420 = vmatpush1.bf16.msra.mxu0 %v396
    %421 = vmatprep.subr.bf16.mxu0 0
    %422 = vmatpush1.bf16.msra.mxu0 %v397
    %423 = vmatprep.subr.bf16.mxu0 0
    %424 = vmatpush1.bf16.msra.mxu0 %v398
    %425 = vmatprep.subr.bf16.mxu0 0
    %426 = vmatpush1.bf16.msra.mxu0 %v399
    %427 = vmatprep.subr.bf16.mxu0 0
    %428 = vmatpush1.bf16.msra.mxu0 %v400
    %429 = vmatprep.subr.bf16.mxu0 0
    %430 = vmatpush1.bf16.msra.mxu0 %v401
    %431 = vmatprep.subr.bf16.mxu0 0
    %432 = vmatpush1.bf16.msra.mxu0 %v402
    %433 = vmatprep.subr.bf16.mxu0 0
    %434 = vmatpush1.bf16.msra.mxu0 %v403
    %435 = vmatprep.subr.bf16.mxu0 0
    %436 = vmatpush1.bf16.msra.mxu0 %v404
    %437 = vmatprep.subr.bf16.mxu0 0
    %438 = vmatpush1.bf16.msra.mxu0 %v405
    %439 = vmatprep.subr.bf16.mxu0 0
    %440 = vmatpush1.bf16.msra.mxu0 0
    %441 = vmatprep.subr.bf16.mxu0 0
    %442 = vmatpush1.bf16.msra.mxu0 0
    %443 = vmatprep.subr.bf16.mxu0 0
    %444 = vmatpush1.bf16.msra.mxu0 0
    %445 = vmatprep.subr.bf16.mxu0 0
    %446 = vmatpush1.bf16.msra.mxu0 0
    %447 = vmatprep.subr.bf16.mxu0 0
    %448 = vmatpush1.bf16.msra.mxu0 0
    %449 = vmatprep.subr.bf16.mxu0 0
    %450 = vmatpush1.bf16.msra.mxu0 0
    %451 = vmatprep.mubr.bf16.mxu0 %v417
    %452 = vmatmul.mubr.bf16.gmra.mrb[0].mxu0 %v327
    %v453 = vpop.f32.mrb[0].mxu0
    %v454 = vadd.f32 %v354, %v453
    %v455 = vpop.f32.mrb[0].mxu0
    %v456 = vpop.f32.mrb[0].mxu0
    %v457 = vadd.f32 %v354, %v456
    %v458 = vpop.f32.mrb[0].mxu0
    %459 = vdwg.mxu0
    %v460 = vmax.f32 %v454, 0.0
    %v461 = vmax.f32 %v457, 0.0
    %v462 = vpack.c.bf16 %v461, %v460
    %v463 = vld [vmem:[%s5] sm:$0xf]
    %v464 = vld [vmem:[%s5 + $0x4] sm:$0xf]
    %v465 = vld [vmem:[%s5 + $0x8] sm:$0xf]
    %v466 = vld [vmem:[%s5 + $0xc] sm:$0xf]
    %v467 = vld [vmem:[%s5 + $0x10] sm:$0xf]
    %v468 = vld [vmem:[%s5 + $0x14] sm:$0xf]
    %v469 = vld [vmem:[%s5 + $0x18] sm:$0xf]
    %v470 = vld [vmem:[%s5 + $0x1c] sm:$0xf]
    %v471 = vld [vmem:[%s5 + $0x20] sm:$0xf]
    %v472 = vld [vmem:[%s5 + $0x24] sm:$0xf]
    %v473 = vld [vmem:[%s6] sm:$0x1]
    %v475 = vlaneseq
    %v476 = vshrl.u32 %v475, 7
    %v477 = vsub.s32 0, %v476
    %v478 = vrot.slane %v473, %v477
    %v490 = vunpack.c.l.b16 %v463
    %v491 = vunpack.c.l.b16 %v464
    %v492 = vunpack.c.l.b16 %v465
    %v493 = vunpack.c.l.b16 %v466
    %v494 = vunpack.c.l.b16 %v467
    %v495 = vunpack.c.l.b16 %v468
    %v496 = vunpack.c.l.b16 %v469
    %v497 = vunpack.c.l.b16 %v470
    %v498 = vunpack.c.l.b16 %v471
    %v499 = vunpack.c.l.b16 %v472
    %v500 = vpack.c.b16 %v491, %v490
    %v501 = vpack.c.b16 %v493, %v492
    %v502 = vpack.c.b16 %v495, %v494
    %v503 = vpack.c.b16 %v497, %v496
    %v504 = vpack.c.b16 %v499, %v498
    %vm510 = vcmask 654336
    %v512 = vsel %vm510, %v462, 0
    %514 = vmatprep.subr.bf16.mxu0 0
    %515 = vmatpush1.bf16.msra.mxu0 %v500
    %516 = vmatprep.subr.bf16.mxu0 0
    %517 = vmatpush1.bf16.msra.mxu0 %v501
    %518 = vmatprep.subr.bf16.mxu0 0
    %519 = vmatpush1.bf16.msra.mxu0 %v502
    %520 = vmatprep.subr.bf16.mxu0 0
    %521 = vmatpush1.bf16.msra.mxu0 %v503
    %522 = vmatprep.subr.bf16.mxu0 0
    %523 = vmatpush1.bf16.msra.mxu0 %v504
    %524 = vmatprep.subr.bf16.mxu0 0
    %525 = vmatpush1.bf16.msra.mxu0 0
    %526 = vmatprep.subr.bf16.mxu0 0
    %527 = vmatpush1.bf16.msra.mxu0 0
    %528 = vmatprep.subr.bf16.mxu0 0
    %529 = vmatpush1.bf16.msra.mxu0 0
    %530 = vmatprep.subr.bf16.mxu0 0
    %531 = vmatpush1.bf16.msra.mxu0 0
    %532 = vmatprep.subr.bf16.mxu0 0
    %533 = vmatpush1.bf16.msra.mxu0 0
    %534 = vmatprep.subr.bf16.mxu0 0
    %535 = vmatpush1.bf16.msra.mxu0 0
    %536 = vmatprep.subr.bf16.mxu0 0
    %537 = vmatpush1.bf16.msra.mxu0 0
    %538 = vmatprep.subr.bf16.mxu0 0
    %539 = vmatpush1.bf16.msra.mxu0 0
    %540 = vmatprep.subr.bf16.mxu0 0
    %541 = vmatpush1.bf16.msra.mxu0 0
    %542 = vmatprep.subr.bf16.mxu0 0
    %543 = vmatpush1.bf16.msra.mxu0 0
    %544 = vmatprep.subr.bf16.mxu0 0
    %545 = vmatpush1.bf16.msra.mxu0 0
    %546 = vmatprep.mubr.bf16.mxu0 0
    %547 = vmatmul.mubr.bf16.gmra.mrb[0].mxu0 %v512
    %v548 = vpop.f32.mrb[0].mxu0
    %v549 = vadd.f32 %v478, %v548
    %v550 = vpop.f32.mrb[0].mxu0
    %v551 = vpop.f32.mrb[0].mxu0
    %v552 = vadd.f32 %v478, %v551
    %v553 = vpop.f32.mrb[0].mxu0
    %554 = vdwg.mxu0
    %v555 = vmax.f32 %v549, 0.0
    %v556 = vmax.f32 %v552, 0.0
    %v557 = vpack.c.bf16 %v556, %v555
    %v558 = vld [vmem:[%s7] sm:$0xf]
    %v559 = vld [vmem:[%s7 + $0x4] sm:$0xf]
    %v560 = vld [vmem:[%s7 + $0x8] sm:$0xf]
    %v561 = vld [vmem:[%s7 + $0xc] sm:$0xf]
    %v562 = vld [vmem:[%s7 + $0x10] sm:$0xf]
    %v563 = vld [vmem:[%s8] sm:$0x1]
    %v565 = vlaneseq
    %v566 = vshrl.u32 %v565, 7
    %v567 = vsub.s32 0, %v566
    %v568 = vrot.slane %v563, %v567
    %v575 = vunpack.c.l.b16 %v558
    %v576 = vunpack.c.l.b16 %v559
    %v577 = vunpack.c.l.b16 %v560
    %v578 = vunpack.c.l.b16 %v561
    %v579 = vunpack.c.l.b16 %v562
    %v580 = vpack.c.b16 %v576, %v575
    %v581 = vpack.c.b16 %v578, %v577
    %v582 = vpack.c.b16 %v579, %v579
    %vm585 = vcmask 326656
    %v587 = vsel %vm585, %v557, 0
    %vm589 = vcmask 1043456
    %v591 = vsel %vm589, %v582, 0
    %593 = vmatprep.subr.bf16.mxu0 0
    %594 = vmatpush1.bf16.msra.mxu0 %v580
    %595 = vmatprep.subr.bf16.mxu0 0
    %596 = vmatpush1.bf16.msra.mxu0 %v581
    %597 = vmatprep.subr.bf16.mxu0 0
    %598 = vmatpush1.bf16.msra.mxu0 %v591
    %599 = vmatprep.subr.bf16.mxu0 0
    %600 = vmatpush1.bf16.msra.mxu0 0
    %601 = vmatprep.subr.bf16.mxu0 0
    %602 = vmatpush1.bf16.msra.mxu0 0
    %603 = vmatprep.subr.bf16.mxu0 0
    %604 = vmatpush1.bf16.msra.mxu0 0
    %605 = vmatprep.subr.bf16.mxu0 0
    %606 = vmatpush1.bf16.msra.mxu0 0
    %607 = vmatprep.subr.bf16.mxu0 0
    %608 = vmatpush1.bf16.msra.mxu0 0
    %609 = vmatprep.subr.bf16.mxu0 0
    %610 = vmatpush1.bf16.msra.mxu0 0
    %611 = vmatprep.subr.bf16.mxu0 0
    %612 = vmatpush1.bf16.msra.mxu0 0
    %613 = vmatprep.subr.bf16.mxu0 0
    %614 = vmatpush1.bf16.msra.mxu0 0
    %615 = vmatprep.subr.bf16.mxu0 0
    %616 = vmatpush1.bf16.msra.mxu0 0
    %617 = vmatprep.subr.bf16.mxu0 0
    %618 = vmatpush1.bf16.msra.mxu0 0
    %619 = vmatprep.subr.bf16.mxu0 0
    %620 = vmatpush1.bf16.msra.mxu0 0
    %621 = vmatprep.subr.bf16.mxu0 0
    %622 = vmatpush1.bf16.msra.mxu0 0
    %623 = vmatprep.subr.bf16.mxu0 0
    %624 = vmatpush1.bf16.msra.mxu0 0
    %625 = vmatprep.mubr.bf16.mxu0 0
    %626 = vmatmul.mubr.bf16.gmra.mrb[0].mxu0 %v587
    %v627 = vpop.f32.mrb[0].mxu0
    %v628 = vadd.f32 %v568, %v627
    %v629 = vpop.f32.mrb[0].mxu0
    %v630 = vpop.f32.mrb[0].mxu0
    %v631 = vadd.f32 %v568, %v630
    %v632 = vpop.f32.mrb[0].mxu0
    %633 = vdwg.mxu0
    %v634 = vmax.f32 %v628, 0.0
    %v635 = vmax.f32 %v631, 0.0
    %v636 = vpack.c.bf16 %v635, %v634
    %v637 = vld [vmem:[%s9] sm:$0xf]
    %v638 = vld [vmem:[%s9 + $0x4] sm:$0xf]
    %v639 = vld [vmem:[%s9 + $0x8] sm:$0x3]
    %v640 = vld [vmem:[%s10] sm:$0x1]
    %v642 = vlaneseq
    %v643 = vshrl.u32 %v642, 7
    %v644 = vsub.s32 0, %v643
    %v645 = vrot.slane %v640, %v644
    %v650 = vunpack.c.l.b16 %v637
    %v651 = vunpack.c.l.b16 %v638
    %v652 = vunpack.c.l.b16 %v639
    %v653 = vpack.c.b16 %v651, %v650
    %v654 = vpack.c.b16 %v652, %v652
    %vm656 = vcmask 162816
    %v658 = vsel %vm656, %v636, 0
    %vm660 = vcmask 1041408
    %v662 = vsel %vm660, %v654, 0
    %664 = vmatprep.subr.bf16.mxu0 0
    %665 = vmatpush1.bf16.msra.mxu0 %v653
    %666 = vmatprep.subr.bf16.mxu0 0
    %667 = vmatpush1.bf16.msra.mxu0 %v662
    %668 = vmatprep.subr.bf16.mxu0 0
    %669 = vmatpush1.bf16.msra.mxu0 0
    %670 = vmatprep.subr.bf16.mxu0 0
    %671 = vmatpush1.bf16.msra.mxu0 0
    %672 = vmatprep.subr.bf16.mxu0 0
    %673 = vmatpush1.bf16.msra.mxu0 0
    %674 = vmatprep.subr.bf16.mxu0 0
    %675 = vmatpush1.bf16.msra.mxu0 0
    %676 = vmatprep.subr.bf16.mxu0 0
    %677 = vmatpush1.bf16.msra.mxu0 0
    %678 = vmatprep.subr.bf16.mxu0 0
    %679 = vmatpush1.bf16.msra.mxu0 0
    %680 = vmatprep.subr.bf16.mxu0 0
    %681 = vmatpush1.bf16.msra.mxu0 0
    %682 = vmatprep.subr.bf16.mxu0 0
    %683 = vmatpush1.bf16.msra.mxu0 0
    %684 = vmatprep.subr.bf16.mxu0 0
    %685 = vmatpush1.bf16.msra.mxu0 0
    %686 = vmatprep.subr.bf16.mxu0 0
    %687 = vmatpush1.bf16.msra.mxu0 0
    %688 = vmatprep.subr.bf16.mxu0 0
    %689 = vmatpush1.bf16.msra.mxu0 0
    %690 = vmatprep.subr.bf16.mxu0 0
    %691 = vmatpush1.bf16.msra.mxu0 0
    %692 = vmatprep.subr.bf16.mxu0 0
    %693 = vmatpush1.bf16.msra.mxu0 0
    %694 = vmatprep.subr.bf16.mxu0 0
    %695 = vmatpush1.bf16.msra.mxu0 0
    %696 = vmatprep.mubr.bf16.mxu0 0
    %697 = vmatmul.mubr.bf16.gmra.mrb[0].mxu0 %v658
    %v698 = vpop.f32.mrb[0].mxu0
    %v699 = vadd.f32 %v645, %v698
    %v700 = vpop.f32.mrb[0].mxu0
    %v701 = vpop.f32.mrb[0].mxu0
    %v702 = vadd.f32 %v645, %v701
    %v703 = vpop.f32.mrb[0].mxu0
    %704 = vdwg.mxu0
    %v705 = vmax.f32 %v699, 0.0
    %v706 = vmax.f32 %v702, 0.0
    %v707 = vpack.c.bf16 %v706, %v705
    %v708 = vld [vmem:[%s11] sm:$0xf]
    %v709 = vld [vmem:[%s11 + $0x4] sm:$0x1]
    %v710 = vld [vmem:[%s12] sm:$0x1]
    %v712 = vlaneseq
    %v713 = vshrl.u32 %v712, 7
    %v714 = vsub.s32 0, %v713
    %v715 = vrot.slane %v710, %v714
    %v719 = vunpack.c.l.b16 %v708
    %v720 = vunpack.c.l.b16 %v709
    %v721 = vpack.c.b16 %v720, %v719
    %vm722 = vcmask 80896
    %v724 = vsel %vm722, %v707, 0
    %vm726 = vcmask 1044480
    %v728 = vsel %vm726, %v721, 0
    %730 = vmatprep.subr.bf16.mxu0 0
    %731 = vmatpush1.bf16.msra.mxu0 %v728
    %732 = vmatprep.subr.bf16.mxu0 0
    %733 = vmatpush1.bf16.msra.mxu0 0
    %734 = vmatprep.subr.bf16.mxu0 0
    %735 = vmatpush1.bf16.msra.mxu0 0
    %736 = vmatprep.subr.bf16.mxu0 0
    %737 = vmatpush1.bf16.msra.mxu0 0
    %738 = vmatprep.subr.bf16.mxu0 0
    %739 = vmatpush1.bf16.msra.mxu0 0
    %740 = vmatprep.subr.bf16.mxu0 0
    %741 = vmatpush1.bf16.msra.mxu0 0
    %742 = vmatprep.subr.bf16.mxu0 0
    %743 = vmatpush1.bf16.msra.mxu0 0
    %744 = vmatprep.subr.bf16.mxu0 0
    %745 = vmatpush1.bf16.msra.mxu0 0
    %746 = vmatprep.subr.bf16.mxu0 0
    %747 = vmatpush1.bf16.msra.mxu0 0
    %748 = vmatprep.subr.bf16.mxu0 0
    %749 = vmatpush1.bf16.msra.mxu0 0
    %750 = vmatprep.subr.bf16.mxu0 0
    %751 = vmatpush1.bf16.msra.mxu0 0
    %752 = vmatprep.subr.bf16.mxu0 0
    %753 = vmatpush1.bf16.msra.mxu0 0
    %754 = vmatprep.subr.bf16.mxu0 0
    %755 = vmatpush1.bf16.msra.mxu0 0
    %756 = vmatprep.subr.bf16.mxu0 0
    %757 = vmatpush1.bf16.msra.mxu0 0
    %758 = vmatprep.subr.bf16.mxu0 0
    %759 = vmatpush1.bf16.msra.mxu0 0
    %760 = vmatprep.subr.bf16.mxu0 0
    %761 = vmatpush1.bf16.msra.mxu0 0
    %762 = vmatprep.mubr.bf16.mxu0 0
    %763 = vmatmul.mubr.bf16.gmra.mrb[0].mxu0 %v724
    %v764 = vpop.f32.mrb[0].mxu0
    %v765 = vadd.f32 %v715, %v764
    %v766 = vpop.f32.mrb[0].mxu0
    %v767 = vpop.f32.mrb[0].mxu0
    %v768 = vadd.f32 %v715, %v767
    %v769 = vpop.f32.mrb[0].mxu0
    %770 = vdwg.mxu0
    %v771 = vpack.c.bf16 %v768, %v765
    %v773 = vcombine.high %v771, %v771
    %v775 = vunpack.c.l.s4 1966171168
    %v776 = vunpack.c.0.s8 %v775
    %v777 = vlaneseq
    %v778 = vshrl.u32 %v777, 7
    %v779 = vsub.s32 %v776, %v778
    %v780 = vrot.slane %v771, %v779
    %v782 = vunpack.c.l.s4 1966171168
    %v783 = vunpack.c.0.s8 %v782
    %v784 = vlaneseq
    %v785 = vshrl.u32 %v784, 7
    %v786 = vsub.s32 %v783, %v785
    %v787 = vrot.slane %v773, %v786
    %v788 = vcombine.high %v780, %v780
    %v789 = vcombine.high %v787, %v787
    %v791 = vunpack.c.l.s4 1966171168
    %v792 = vunpack.c.0.s8 %v791
    %v793 = vlaneseq
    %v794 = vshrl.u32 %v793, 7
    %v795 = vsub.s32 %v792, %v794
    %v796 = vrot.slane %v780, %v795
    %v798 = vunpack.c.l.s4 1966171168
    %v799 = vunpack.c.0.s8 %v798
    %v800 = vlaneseq
    %v801 = vshrl.u32 %v800, 7
    %v802 = vsub.s32 %v799, %v801
    %v803 = vrot.slane %v787, %v802
    %v805 = vunpack.c.l.s4 1966171168
    %v806 = vunpack.c.0.s8 %v805
    %v807 = vlaneseq
    %v808 = vshrl.u32 %v807, 7
    %v809 = vsub.s32 %v806, %v808
    %v810 = vrot.slane %v788, %v809
    %v812 = vunpack.c.l.s4 1966171168
    %v813 = vunpack.c.0.s8 %v812
    %v814 = vlaneseq
    %v815 = vshrl.u32 %v814, 7
    %v816 = vsub.s32 %v813, %v815
    %v817 = vrot.slane %v789, %v816
    %v818 = vcombine.high %v796, %v796
    %v819 = vcombine.high %v803, %v803
    %v820 = vcombine.high %v810, %v810
    %v821 = vcombine.high %v817, %v817
    %830 = vst [vmem:[#allocation4] sm:$0x1] %v796
    %831 = vst [vmem:[#allocation4 + $0x1] sm:$0x1] %v810
    %832 = vst [vmem:[#allocation4 + $0x2] sm:$0x1] %v818
    %833 = vst [vmem:[#allocation4 + $0x3] sm:$0x1] %v820
    %834 = vst [vmem:[#allocation4 + $0x4] sm:$0x1] %v803
    %835 = vst [vmem:[#allocation4 + $0x5] sm:$0x1] %v817
    %836 = vst [vmem:[#allocation4 + $0x6] sm:$0x1] %v819
    %837 = vst [vmem:[#allocation4 + $0x7] sm:$0x1] %v821
    %838 = vmax.xlane.f32.xlu0 %v765
    %v839 = vpop.xlane.xlu0 %838
    %840 = vmax.xlane.f32.xlu0 %v768
    %v841 = vpop.xlane.xlu0 %840
    %v842 = vsub.f32 %v765, %v839
    %v843 = vsub.f32 %v768, %v841
    %v844 = vmul.f32 %v842, 1.442695
    %v845 = vpow.pop %v844
    %v846 = vmul.f32 %v843, 1.442695
    %v847 = vpow.pop %v846
    %848 = vadd.xlane.f32.xlu0 %v845
    %v849 = vpop.xlane.xlu0 %848
    %850 = vadd.xlane.f32.xlu0 %v847
    %v851 = vpop.xlane.xlu0 %850
    %v852 = vrcp.pop %v849
    %v853 = vrcp.pop %v851
    %v854 = vmul.f32 %v845, %v852
    %v855 = vmul.f32 %v847, %v853
    %v856 = vpack.c.bf16 %v855, %v854
    %v858 = vcombine.high %v856, %v856
    %v860 = vunpack.c.l.s4 1966171168
    %v861 = vunpack.c.0.s8 %v860
    %v862 = vlaneseq
    %v863 = vshrl.u32 %v862, 7
    %v864 = vsub.s32 %v861, %v863
    %v865 = vrot.slane %v856, %v864
    %v867 = vunpack.c.l.s4 1966171168
    %v868 = vunpack.c.0.s8 %v867
    %v869 = vlaneseq
    %v870 = vshrl.u32 %v869, 7
    %v871 = vsub.s32 %v868, %v870
    %v872 = vrot.slane %v858, %v871
    %v873 = vcombine.high %v865, %v865
    %v874 = vcombine.high %v872, %v872
    %v876 = vunpack.c.l.s4 1966171168
    %v877 = vunpack.c.0.s8 %v876
    %v878 = vlaneseq
    %v879 = vshrl.u32 %v878, 7
    %v880 = vsub.s32 %v877, %v879
    %v881 = vrot.slane %v865, %v880
    %v883 = vunpack.c.l.s4 1966171168
    %v884 = vunpack.c.0.s8 %v883
    %v885 = vlaneseq
    %v886 = vshrl.u32 %v885, 7
    %v887 = vsub.s32 %v884, %v886
    %v888 = vrot.slane %v872, %v887
    %v890 = vunpack.c.l.s4 1966171168
    %v891 = vunpack.c.0.s8 %v890
    %v892 = vlaneseq
    %v893 = vshrl.u32 %v892, 7
    %v894 = vsub.s32 %v891, %v893
    %v895 = vrot.slane %v873, %v894
    %v897 = vunpack.c.l.s4 1966171168
    %v898 = vunpack.c.0.s8 %v897
    %v899 = vlaneseq
    %v900 = vshrl.u32 %v899, 7
    %v901 = vsub.s32 %v898, %v900
    %v902 = vrot.slane %v874, %v901
    %v903 = vcombine.high %v881, %v881
    %v904 = vcombine.high %v888, %v888
    %v905 = vcombine.high %v895, %v895
    %v906 = vcombine.high %v902, %v902
    %915 = vst [vmem:[#allocation5] sm:$0x1] %v881
    %916 = vst [vmem:[#allocation5 + $0x1] sm:$0x1] %v895
    %917 = vst [vmem:[#allocation5 + $0x2] sm:$0x1] %v903
    %918 = vst [vmem:[#allocation5 + $0x3] sm:$0x1] %v905
    %919 = vst [vmem:[#allocation5 + $0x4] sm:$0x1] %v888
    %920 = vst [vmem:[#allocation5 + $0x5] sm:$0x1] %v902
    %921 = vst [vmem:[#allocation5 + $0x6] sm:$0x1] %v904
    %922 = vst [vmem:[#allocation5 + $0x7] sm:$0x1] %v906
    // Predicated region
    $region58: #{mlp_forward.1} parent=1 // pred_check
      _
    $region59: #{mlp_forward.1} parent=1 // pred_check_branch
      %924 = sbr.rel (0) target = $region61
    $region60: #{mlp_forward.1} parent=1 // pred_region
      // Predicated region
      $region62: #{mlp_forward.1} parent=60 // pred_check
        _
      $region63: #{mlp_forward.1} parent=60 // pred_check_branch
        %926 = sbr.rel (0) target = $region65
      $region64: #{mlp_forward.1} parent=60 // pred_region
        // Predicated region
        $region66: #{mlp_forward.1} parent=64 // pred_check
          _
        $region67: #{mlp_forward.1} parent=64 // pred_check_branch
          %928 = sbr.rel target = $region69
        $region68: #{mlp_forward.1} parent=64 // pred_region
          // Predicated region
          $region81: #{mlp_forward.1} parent=68 // pred_check
            _
          $region82: #{mlp_forward.1} parent=68 // pred_check_branch
            %943 = sbr.rel (0) target = $region84
          $region83: #{mlp_forward.1} parent=68 // pred_region
            loop: start=0, step=1, limit=1
            $region85: #{mlp_forward.1} parent=83 // loop_pre_header
              _
            $region86: #{mlp_forward.1} parent=83 // loop_header
              %s946 = sphi 0, %s950
              %p947 = scmp.ge.s32.totalorder %s946, 1
              %s951 = sphi [#allocation4], [#allocation4]
              %s952 = sphi %s13, %s13
            $region87: #{mlp_forward.1} parent=83 // loop_header_branch
              %949 = sbr.rel (%p947) target = $region91
            $region88: #{mlp_forward.1} parent=83 // loop_body
              %v953 = vld [vmem:[%s951] sm:$0x1]
              %954 = vst [vmem:[%s952] sm:$0x1] %v953
            $region89: #{mlp_forward.1} parent=83 // loop_footer
              %s950 = sadd.s32 1, %s946
            $region90: #{mlp_forward.1} parent=83 // loop_footer_branch
              %945 = sbr.rel target = $region86
            $region91: #{mlp_forward.1} parent=83 // loop_exit
              _
          $region84: #{mlp_forward.1} parent=68 // pred_fallthru
            _
        $region69: #{mlp_forward.1} parent=64 // pred_fallthru
          _
        // Predicated region
        $region70: #{mlp_forward.1} parent=64 // pred_check
          _
        $region71: #{mlp_forward.1} parent=64 // pred_check_branch
          %930 = sbr.rel (0) target = $region73
        $region72: #{mlp_forward.1} parent=64 // pred_region
          loop: start=0, step=1, limit=1
          $region74: #{mlp_forward.1} parent=72 // loop_pre_header
            _
          $region75: #{mlp_forward.1} parent=72 // loop_header
            %s933 = sphi 0, %s937
            %p934 = scmp.ge.s32.totalorder %s933, 1
            %s938 = sphi [#allocation4], [#allocation4]
            %s939 = sphi %s13, %s13
          $region76: #{mlp_forward.1} parent=72 // loop_header_branch
            %936 = sbr.rel (%p934) target = $region80
          $region77: #{mlp_forward.1} parent=72 // loop_body
            %v940 = vld [vmem:[%s938] sm:$0x1]
            %941 = vst [vmem:[%s939] sm:$0x1] %v940
          $region78: #{mlp_forward.1} parent=72 // loop_footer
            %s937 = sadd.s32 1, %s933
          $region79: #{mlp_forward.1} parent=72 // loop_footer_branch
            %932 = sbr.rel target = $region75
          $region80: #{mlp_forward.1} parent=72 // loop_exit
            _
        $region73: #{mlp_forward.1} parent=64 // pred_fallthru
          _
      $region65: #{mlp_forward.1} parent=60 // pred_fallthru
        _
      %955 = vnop
    $region61: #{mlp_forward.1} parent=1 // pred_fallthru
      _
    // Predicated region
    $region92: #{mlp_forward.1} parent=1 // pred_check
      _
    $region93: #{mlp_forward.1} parent=1 // pred_check_branch
      %957 = sbr.rel (0) target = $region95
    $region94: #{mlp_forward.1} parent=1 // pred_region
      // Predicated region
      $region96: #{mlp_forward.1} parent=94 // pred_check
        _
      $region97: #{mlp_forward.1} parent=94 // pred_check_branch
        %959 = sbr.rel (0) target = $region99
      $region98: #{mlp_forward.1} parent=94 // pred_region
        // Predicated region
        $region100: #{mlp_forward.1} parent=98 // pred_check
          _
        $region101: #{mlp_forward.1} parent=98 // pred_check_branch
          %961 = sbr.rel target = $region103
        $region102: #{mlp_forward.1} parent=98 // pred_region
          // Predicated region
          $region115: #{mlp_forward.1} parent=102 // pred_check
            _
          $region116: #{mlp_forward.1} parent=102 // pred_check_branch
            %976 = sbr.rel (0) target = $region118
          $region117: #{mlp_forward.1} parent=102 // pred_region
            loop: start=0, step=1, limit=1
            $region119: #{mlp_forward.1} parent=117 // loop_pre_header
              _
            $region120: #{mlp_forward.1} parent=117 // loop_header
              %s979 = sphi 0, %s983
              %p980 = scmp.ge.s32.totalorder %s979, 1
              %s984 = sphi [#allocation5], [#allocation5]
              %s985 = sphi %s14, %s14
            $region121: #{mlp_forward.1} parent=117 // loop_header_branch
              %982 = sbr.rel (%p980) target = $region125
            $region122: #{mlp_forward.1} parent=117 // loop_body
              %v986 = vld [vmem:[%s984] sm:$0x1]
              %987 = vst [vmem:[%s985] sm:$0x1] %v986
            $region123: #{mlp_forward.1} parent=117 // loop_footer
              %s983 = sadd.s32 1, %s979
            $region124: #{mlp_forward.1} parent=117 // loop_footer_branch
              %978 = sbr.rel target = $region120
            $region125: #{mlp_forward.1} parent=117 // loop_exit
              _
          $region118: #{mlp_forward.1} parent=102 // pred_fallthru
            _
        $region103: #{mlp_forward.1} parent=98 // pred_fallthru
          _
        // Predicated region
        $region104: #{mlp_forward.1} parent=98 // pred_check
          _
        $region105: #{mlp_forward.1} parent=98 // pred_check_branch
          %963 = sbr.rel (0) target = $region107
        $region106: #{mlp_forward.1} parent=98 // pred_region
          loop: start=0, step=1, limit=1
          $region108: #{mlp_forward.1} parent=106 // loop_pre_header
            _
          $region109: #{mlp_forward.1} parent=106 // loop_header
            %s966 = sphi 0, %s970
            %p967 = scmp.ge.s32.totalorder %s966, 1
            %s971 = sphi [#allocation5], [#allocation5]
            %s972 = sphi %s14, %s14
          $region110: #{mlp_forward.1} parent=106 // loop_header_branch
            %969 = sbr.rel (%p967) target = $region114
          $region111: #{mlp_forward.1} parent=106 // loop_body
            %v973 = vld [vmem:[%s971] sm:$0x1]
            %974 = vst [vmem:[%s972] sm:$0x1] %v973
          $region112: #{mlp_forward.1} parent=106 // loop_footer
            %s970 = sadd.s32 1, %s966
          $region113: #{mlp_forward.1} parent=106 // loop_footer_branch
            %965 = sbr.rel target = $region109
          $region114: #{mlp_forward.1} parent=106 // loop_exit
            _
        $region107: #{mlp_forward.1} parent=98 // pred_fallthru
          _
      $region99: #{mlp_forward.1} parent=94 // pred_fallthru
        _
      %988 = vnop
    $region95: #{mlp_forward.1} parent=1 // pred_fallthru
      _
    // Predicated region
    $region126: #{mlp_forward.1} parent=1 // pred_check
      _
    $region127: #{mlp_forward.1} parent=1 // pred_check_branch
      %990 = sbr.rel (0) target = $region129
    $region128: #{mlp_forward.1} parent=1 // pred_region
      _
    $region129: #{mlp_forward.1} parent=1 // pred_fallthru
      _
    // Predicated region
    $region130: #{mlp_forward.1} parent=1 // pred_check
      _
    $region131: #{mlp_forward.1} parent=1 // pred_check_branch
      %992 = sbr.rel (0) target = $region133
    $region132: #{mlp_forward.1} parent=1 // pred_region
      _
    $region133: #{mlp_forward.1} parent=1 // pred_fallthru
      _
    %993 = vsyncpa [#allocation3], 1

</llo_original>
